<compile_context>
chip_gen: v7x
topology: tpu7x:2x2x1
jax: 0.10.0
libtpu: 0.0.40
codegen_flags: <defaults>
</compile_context>

<pallas_src>
import functools

import jax
import jax.numpy as jnp
from jax import lax
from jax.experimental import pallas as pl
from jax.experimental.pallas import tpu as pltpu


# ------------------------------- tiling knobs -------------------------------
_VMEM_BUDGET = 34 * 1024 * 1024     # operand budget used for tile sizing
_VMEM_LIMIT = 48 * 1024 * 1024      # raised scoped-VMEM limit (ok v5e/v6e/v7x)
_TM_CAP = 2048                      # max output rows per tile


def _cdiv(a, b):
    return -(-a // b)


def _round_up(a, m):
    return _cdiv(a, m) * m


def _lane_granularity():
    # Only used when a weight tile would overflow the budget and the Cout axis
    # must be tiled: v6e/v7x MXUs are 256 wide, v5e is 128.
    try:
        kind = jax.devices()[0].device_kind.lower()
        return 128 if "v5" in kind else 256
    except Exception:
        return 128


def _pick_tn(kc, cout, wb=2):
    """Whole Cout when the double-buffered weight tile fits the budget,
    otherwise an MXU-friendly lane-granularity tile."""
    gran = _lane_granularity()
    if 2 * kc * cout * wb <= int(0.66 * _VMEM_BUDGET) or cout % gran != 0:
        return cout
    return gran


def _pick_tm(rows, weight_bufs_bytes, bytes_per_row):
    """Largest row tile (multiple of 8, <= _TM_CAP) that fits the VMEM budget
    after the (double-buffered) weight tile, rebalanced so M padding is small.
    Returns (TM, num_row_tiles)."""
    cap = (_VMEM_BUDGET - weight_bufs_bytes) // bytes_per_row
    cap = max(128, min(_TM_CAP, cap // 128 * 128))
    tm0 = min(cap, _round_up(rows, 8))
    n_t = _cdiv(rows, tm0)
    tm = _round_up(_cdiv(rows, n_t), 8)
    return tm, n_t


# ----------------------------------------------------------------------------
# Pallas kernel 1: fused  (X @ W) + bias  [+ leaky_relu]
# ----------------------------------------------------------------------------
def _mm_bias_act_kernel(x_ref, w_ref, b_ref, o_ref, *, slope, apply_act):
    acc = jnp.dot(x_ref[...], w_ref[...], preferred_element_type=jnp.float32)
    acc = acc + b_ref[...]                       # (TM, TN) + (1, TN)
    if apply_act:
        acc = jnp.where(acc >= 0, acc, acc * slope)
    o_ref[...] = acc.astype(o_ref.dtype)


def matmul_bias_act(x, w, b, *, slope=0.1, apply_act=True,
                    out_dtype=jnp.bfloat16):
    """Fused (x @ w) + b [+ leaky_relu].  x:(M,Kc), w:(Kc,Cout), b:(Cout,)."""
    M, Kc = x.shape
    Kc2, Cout = w.shape
    assert Kc == Kc2
    x = x.astype(jnp.bfloat16)                   # bf16 operands for the MXU
    w = w.astype(jnp.bfloat16)
    b2 = b.reshape(1, Cout).astype(jnp.float32)

    xb = wb = 2
    ob = jnp.dtype(out_dtype).itemsize
    TN = _pick_tn(Kc, Cout, wb)
    assert Cout % TN == 0

    TM, n_i = _pick_tm(M, 2 * Kc * TN * wb, 2 * Kc * xb + 2 * TN * ob)
    Mp = n_i * TM
    if Mp > M:
        x = jnp.pad(x, ((0, Mp - M), (0, 0)))

    grid = (Cout // TN, n_i)        # Cout tiles outer so the weight stays put
    kern = functools.partial(_mm_bias_act_kernel, slope=slope,
                             apply_act=apply_act)
    out = pl.pallas_call(
        kern,
        out_shape=jax.ShapeDtypeStruct((Mp, Cout), out_dtype),
        grid_spec=pltpu.PrefetchScalarGridSpec(
            num_scalar_prefetch=0,
            grid=grid,
            in_specs=[
                pl.BlockSpec((TM, Kc), lambda j, i: (i, 0)),
                pl.BlockSpec((Kc, TN), lambda j, i: (0, j)),
                pl.BlockSpec((1, TN), lambda j, i: (0, j)),
            ],
            out_specs=pl.BlockSpec((TM, TN), lambda j, i: (i, j)),
        ),
        compiler_params=pltpu.CompilerParams(
            dimension_semantics=("parallel", "parallel"),
            vmem_limit_bytes=_VMEM_LIMIT),
        cost_estimate=pl.CostEstimate(
            flops=2 * Mp * Kc * Cout,
            transcendentals=0,
            bytes_accessed=Mp * Kc * xb + Kc * Cout * wb + Mp * Cout * ob),
    )(x, w, b2)
    return out[:M]


# ----------------------------------------------------------------------------
# Pallas kernel 2: (K,1)/(S,1) conv without im2col duplication ("grouped taps")
# ----------------------------------------------------------------------------
def _tap_conv_kernel(x_ref, w_ref, b_ref, o_ref, *, stride, cin, slope,
                     apply_act):
    # x_ref: (TM + halo, S*Cin) grouped slab (channel-last, bf16)
    # w_ref: (K, Cin, TN);  b_ref: (1, TN);  o_ref: (TM, TN)
    tm, tn = o_ref.shape
    ktaps = w_ref.shape[0]
    acc = jnp.zeros((tm, tn), jnp.float32)
    for k in range(ktaps):                       # static Python loop, K <= 5
        xk = x_ref[pl.ds(k // stride, tm), pl.ds((k % stride) * cin, cin)]
        acc += jnp.dot(xk, w_ref[k], preferred_element_type=jnp.float32)
    acc = acc + b_ref[...]
    if apply_act:
        acc = jnp.where(acc >= 0, acc, acc * slope)
    o_ref[...] = acc.astype(o_ref.dtype)


def conv_kx1_taps(x_cl, w, b, *, stride, slope=0.1, apply_act=True,
                  out_dtype=jnp.bfloat16):
    """(K,1)/(S,1) Conv2d, 'same' H padding, channel-last activations, with NO
    im2col duplication.  The padded H axis is viewed as (Hg, S) groups; tap k
    of output row h lives at grouped row h + k//S, column group k%S, so one
    (TM + (K-1)//S, S*Cin) slab per grid step feeds all K tap matmuls.
    Requires Cin % 128 == 0 when stride > 1 (lane-aligned column groups)."""
    B, Wd, H, Cin = x_cl.shape
    Cout, _, K, _ = w.shape
    S = stride
    P = K // 2
    Hout = (H + 2 * P - K) // S + 1
    dg = (K - 1) // S                     # grouped halo rows per tile
    GW = S * Cin                          # grouped-row width
    assert S == 1 or Cin % 128 == 0

    wt = jnp.transpose(w[:, :, :, 0], (2, 1, 0)).astype(jnp.bfloat16)  # (K,Cin,Cout)
    b2 = b.reshape(1, Cout).astype(jnp.float32)
    x_cl = x_cl.astype(jnp.bfloat16)

    xb = wb = 2
    ob = jnp.dtype(out_dtype).itemsize
    TN = _pick_tn(K * Cin, Cout, wb)
    assert Cout % TN == 0
    TM, n_t = _pick_tm(Hout, 2 * K * Cin * TN * wb, 2 * GW * xb + 2 * TN * ob)

    Hg = n_t * TM + dg                    # grouped rows required
    Hp = Hg * S                           # padded H length (multiple of S)
    back = Hp - H - P
    assert back >= 0
    xp = jnp.pad(x_cl, ((0, 0), (0, 0), (P, back), (0, 0)))
    xg = xp.reshape(B, Wd, Hg, GW)        # free reinterpretation
    if n_t == 1:
        slabs = xg.reshape(B * Wd, Hg, GW)
    else:
        starts = jnp.arange(n_t) * TM
        gidx = starts[:, None] + jnp.arange(TM + dg)[None, :]
        slabs = xg[:, :, gidx, :].reshape(B * Wd * n_t, TM + dg, GW)

    grid = (Cout // TN, B * Wd * n_t)
    kern = functools.partial(_tap_conv_kernel, stride=S, cin=Cin,
                             slope=slope, apply_act=apply_act)
    out = pl.pallas_call(
        kern,
        out_shape=jax.ShapeDtypeStruct((B * Wd * n_t, TM, Cout), out_dtype),
        grid_spec=pltpu.PrefetchScalarGridSpec(
            num_scalar_prefetch=0,
            grid=grid,
            in_specs=[
                pl.BlockSpec((None, TM + dg, GW), lambda j, i: (i, 0, 0)),
                pl.BlockSpec((K, Cin, TN), lambda j, i: (0, 0, j)),
                pl.BlockSpec((1, TN), lambda j, i: (0, j)),
            ],
            out_specs=pl.BlockSpec((None, TM, TN), lambda j, i: (i, 0, j)),
        ),
        compiler_params=pltpu.CompilerParams(
            dimension_semantics=("parallel", "parallel"),
            vmem_limit_bytes=_VMEM_LIMIT),
        cost_estimate=pl.CostEstimate(
            flops=2 * B * Wd * n_t * TM * K * Cin * Cout,
            transcendentals=0,
            bytes_accessed=int(slabs.size) * xb + int(wt.size) * wb
            + B * Wd * n_t * TM * Cout * ob),
    )(slabs, wt, b2)

    return out.reshape(B, Wd, n_t * TM, Cout)[:, :, :Hout, :]


# ----------------------------------------------------------------------------
# Strided (K,1)/(S,1) conv for small-Cin layers: im2col (strided slices, no
# gather) + fused matmul, with row-folding for lane-dense stores.
# ----------------------------------------------------------------------------
def conv_kx1_im2col(x_cl, w, b, *, stride, slope=0.1, apply_act=True,
                    out_dtype=jnp.bfloat16):
    """Used only for the tiny-Cin layers (1->32, 32->128) where the K-times
    duplication is cheap and per-tap lane slices would be misaligned."""
    B, Wd, H, Cin = x_cl.shape
    Cout, _, K, _ = w.shape
    P = K // 2
    S = stride
    Hout = (H + 2 * P - K) // S + 1

    xp = jnp.pad(x_cl.astype(jnp.bfloat16), ((0, 0), (0, 0), (P, P), (0, 0)))
    taps = [xp[:, :, k:k + (Hout - 1) * S + 1:S, :] for k in range(K)]
    x_col = jnp.concatenate(taps, axis=-1).reshape(B * Wd * Hout, K * Cin)

    w_flat = jnp.transpose(w[:, :, :, 0], (2, 1, 0)).reshape(K * Cin, Cout)
    bias = b
    M = x_col.shape[0]

    fold = 128 // Cout if (Cout < 128 and 128 % Cout == 0) else 1
    if fold > 1:
        # Lane-densify the store: process `fold` consecutive output rows per
        # matmul row against a block-diagonal weight (reshapes are free).
        Mf = _round_up(M, fold)
        if Mf > M:
            x_col = jnp.pad(x_col, ((0, Mf - M), (0, 0)))
        x_col = x_col.reshape(Mf // fold, fold * K * Cin)
        w_flat = jnp.kron(jnp.eye(fold, dtype=w_flat.dtype), w_flat)
        bias = jnp.tile(b, fold)

    y = matmul_bias_act(x_col, w_flat, bias, slope=slope,
                        apply_act=apply_act, out_dtype=out_dtype)
    if fold > 1:
        y = y.reshape(-1, Cout)[:M]
    return y.reshape(B, Wd, Hout, Cout)


# ----------------------------------------------------------------------------
# conv_post: Conv2d(1024 -> 1, (3,1), stride 1, padding (1,0)), no im2col
# ----------------------------------------------------------------------------
def conv_post_3x1(x_cl, w, b):
    """Z[..., k] = x . w_k (one fused matmul over channels, Cout=K), then a
    tap-shifted sum along H (tiny XLA epilogue).  Returns (B, W, H, 1) f32."""
    B, Wd, H, Cin = x_cl.shape
    Cout, _, K, _ = w.shape
    assert Cout == 1
    P = K // 2
    w2 = w[0, :, :, 0]                              # (Cin, K)
    z = matmul_bias_act(x_cl.reshape(B * Wd * H, Cin), w2,
                        jnp.zeros((K,), jnp.float32),
                        apply_act=False, out_dtype=jnp.float32)
    z = z.reshape(B, Wd, H, K)
    out = jnp.zeros((B, Wd, H), jnp.float32)
    for k in range(K):
        d = k - P
        zk = z[:, :, max(d, 0): H + min(d, 0), k]
        zk = jnp.pad(zk, ((0, 0), (0, 0), (max(-d, 0), max(d, 0))))
        out = out + zk
    return (out + b[0])[..., None]                  # (B, W, H, 1)


# ----------------------------------------------------------------------------
# DiscriminatorP module (parameters built deterministically in-script)
# ----------------------------------------------------------------------------
class DiscriminatorP:
    # NOTE: torch's weight_norm parametrization is folded into plain conv
    # weights at init time (forward-pass semantics are identical).
    def __init__(self, period, in_channels=1, kernel_size=5, stride=3,
                 lrelu_slope=0.1, num_embeddings=None, key=None):
        if key is None:
            key = jax.random.PRNGKey(0)
        self.period = period
        self.lrelu_slope = lrelu_slope

        cfgs = [
            (in_channels, 32, kernel_size, stride),
            (32, 128, kernel_size, stride),
            (128, 512, kernel_size, stride),
            (512, 1024, kernel_size, stride),
            (1024, 1024, kernel_size, 1),
        ]
        keys = jax.random.split(key, 2 * len(cfgs) + 2)
        self.convs = []
        for i, (cin, cout, k, s) in enumerate(cfgs):
            w = 0.05 * jax.random.normal(keys[2 * i], (cout, cin, k, 1),
                                         dtype=jnp.float32)
            bb = 0.01 * jax.random.normal(keys[2 * i + 1], (cout,),
                                          dtype=jnp.float32)
            self.convs.append((w, bb, s))

        w = 0.05 * jax.random.normal(keys[-2], (1, 1024, 3, 1), jnp.float32)
        bb = 0.01 * jax.random.normal(keys[-1], (1,), jnp.float32)
        self.conv_post = (w, bb)

        self.emb = None
        if num_embeddings is not None:
            # torch init zeros the embedding table.
            self.emb = jnp.zeros((num_embeddings, 1024), jnp.float32)

    def __call__(self, x, cond_embedding_id=None):
        fmap = []
        b, c, t = x.shape
        if t % self.period != 0:
            n_pad = self.period - t % self.period
            x = jnp.pad(x, ((0, 0), (0, 0), (0, n_pad)), mode="reflect")
            t = t + n_pad
        # torch view: (B, C, H, W) with H = t // period, W = period.
        x = x.reshape(b, c, t // self.period, self.period)
        # Channel-last working layout (B, W, H, C); NCHW only at the module
        # boundary / fmap emission (saves a full transpose per layer).
        x_cl = jnp.transpose(x, (0, 3, 2, 1))

        for i, (w, bias, s) in enumerate(self.convs):
            cin = w.shape[1]
            if s == 1 or cin % 128 == 0:
                x_cl = conv_kx1_taps(x_cl, w, bias, stride=s,
                                     slope=self.lrelu_slope)
            else:
                x_cl = conv_kx1_im2col(x_cl, w, bias, stride=s,
                                       slope=self.lrelu_slope)
            if i > 0:
                fmap.append(jnp.transpose(x_cl, (0, 3, 2, 1))
                            .astype(jnp.float32))

        if cond_embedding_id is not None and self.emb is not None:
            emb = self.emb[cond_embedding_id].reshape(1, 1, 1, -1)
            h = (x_cl.astype(jnp.float32) * emb).sum(axis=-1, keepdims=True)
        else:
            h = 0.0

        w, bias = self.conv_post
        y = conv_post_3x1(x_cl, w, bias) + h            # (B, W, H, 1) f32
        y_nchw = jnp.transpose(y, (0, 3, 2, 1))         # (B, 1, H, W)
        fmap.append(y_nchw)   # torch appends, then `x += h` mutates in place
        return y_nchw.reshape(y_nchw.shape[0], -1), fmap


# ----------------------------------------------------------------------------
# Pure-JAX reference (lax.conv, f32) for correctness checking
# ----------------------------------------------------------------------------
def _ref_conv(x, w, b, stride, padding):
    y = lax.conv_general_dilated(
        x, w, window_strides=(stride, 1),
        padding=((padding, padding), (0, 0)),
        dimension_numbers=("NCHW", "OIHW", "NCHW"))
    return y + b.reshape(1, -1, 1, 1)


def _ref_forward(model, x):
    b, c, t = x.shape
    if t % model.period != 0:
        n_pad = model.period - t % model.period
        x = jnp.pad(x, ((0, 0), (0, 0), (0, n_pad)), mode="reflect")
        t = t + n_pad
    x = x.reshape(b, c, t // model.period, model.period)
    fmap = []
    for i, (w, bias, s) in enumerate(model.convs):
        x = _ref_conv(x, w, bias, s, w.shape[2] // 2)
        x = jnp.where(x >= 0, x, model.lrelu_slope * x)
        if i > 0:
            fmap.append(x)
    w, bias = model.conv_post
    x = _ref_conv(x, w, bias, 1, w.shape[2] // 2)
    fmap.append(x)
    return x.reshape(x.shape[0], -1), fmap


if __name__ == "__main__":
    key = jax.random.PRNGKey(0)
    k_model, k_x = jax.random.split(key)

    period = 2
    B, C, T = 2, 1, 347       # odd T -> exercises the reflect pad
    model = DiscriminatorP(period=period, in_channels=C, key=k_model)

    x = jax.random.normal(k_x, (B, C, T), dtype=jnp.float32)

    out, fmap = model(x)
    out = jax.block_until_ready(out)
    for f in fmap:
        jax.block_until_ready(f)

    # sanity check against pure-JAX f32 reference (bf16 MXU path -> loose tol)
    ref_out, ref_fmap = _ref_forward(model, x)
    assert out.shape == ref_out.shape
    assert jnp.allclose(out, ref_out, atol=7.5e-2, rtol=7.5e-2), \
        "final output mismatch"
    assert len(fmap) == len(ref_fmap)
    for a, r in zip(fmap, ref_fmap):
        assert a.shape == r.shape, (a.shape, r.shape)
        assert jnp.allclose(a, r, atol=7.5e-2, rtol=7.5e-2), "fmap mismatch"

    print("KERNEL_OK")
</pallas_src>

<mosaic_0001>
module attributes {stable_mosaic.version = 11 : i64} {
  func.func @_mm_bias_act_kernel(%arg0: i32, %arg1: i32, %arg2: memref<64x20xbf16, #tpu.memory_space<vmem>>, %arg3: memref<20x128xbf16, #tpu.memory_space<vmem>>, %arg4: memref<1x128xf32, #tpu.memory_space<vmem>>, %arg5: memref<64x128xbf16, #tpu.memory_space<vmem>>) attributes {dimension_semantics = [#tpu.dimension_semantics<parallel>, #tpu.dimension_semantics<parallel>], iteration_bounds = array<i64: 1, 1>, scalar_prefetch = 0 : i64, scratch_operands = 0 : i64, tpu.core_type = #tpu.core_type<tc>, window_params = [{transform_indices = @transform_0, window_bounds = array<i64: 64, 20>}, {transform_indices = @transform_1, window_bounds = array<i64: 20, 128>}, {transform_indices = @transform_2, window_bounds = array<i64: 1, 128>}, {transform_indices = @transform_3, window_bounds = array<i64: 64, 128>}]} {
    %c0 = arith.constant 0 : index
    %c0_0 = arith.constant 0 : index
    %0 = vector.load %arg2[%c0, %c0_0] : memref<64x20xbf16, #tpu.memory_space<vmem>>, vector<64x20xbf16>
    %c0_1 = arith.constant 0 : index
    %c0_2 = arith.constant 0 : index
    %1 = vector.load %arg3[%c0_1, %c0_2] : memref<20x128xbf16, #tpu.memory_space<vmem>>, vector<20x128xbf16>
    %cst = arith.constant dense<0.000000e+00> : vector<64x128xf32>
    %2 = tpu.matmul %0, %1, %cst {dimension_numbers = #tpu.dot_dimension_numbers<[1], [0], [0], [1], [0, 0, 1, 1], [], []>} : vector<64x20xbf16>, vector<20x128xbf16>, vector<64x128xf32> -> vector<64x128xf32>
    %c0_3 = arith.constant 0 : index
    %c0_4 = arith.constant 0 : index
    %3 = vector.load %arg4[%c0_3, %c0_4] : memref<1x128xf32, #tpu.memory_space<vmem>>, vector<1x128xf32>
    %4 = vector.broadcast %3 : vector<1x128xf32> to vector<64x128xf32>
    %5 = arith.addf %2, %4 : vector<64x128xf32>
    %cst_5 = arith.constant 0.000000e+00 : f32
    %6 = vector.broadcast %cst_5 : f32 to vector<64x128xf32>
    %7 = arith.cmpf oge, %5, %6 : vector<64x128xf32>
    %cst_6 = arith.constant 1.000000e-01 : f32
    %8 = vector.broadcast %cst_6 : f32 to vector<64x128xf32>
    %9 = arith.mulf %5, %8 : vector<64x128xf32>
    %10 = arith.select %7, %5, %9 : vector<64x128xi1>, vector<64x128xf32>
    %11 = arith.truncf %10 : vector<64x128xf32> to vector<64x128xbf16>
    %c0_7 = arith.constant 0 : index
    %c0_8 = arith.constant 0 : index
    %12 = vector.load %arg5[%c0_7, %c0_8] : memref<64x128xbf16, #tpu.memory_space<vmem>>, vector<64x128xbf16>
    tpu.vector_store %arg5[%c0_7, %c0_8], %11 {strides = array<i32>} : memref<64x128xbf16, #tpu.memory_space<vmem>>, vector<64x128xbf16>,
    return
  }
  func.func @transform_0(%arg0: i32, %arg1: i32) -> (i32, i32) {
    %c0_i32 = arith.constant 0 : i32
    %c0_i32_0 = arith.constant 0 : i32
    return %arg1, %c0_i32 : i32, i32
  }
  func.func @transform_1(%arg0: i32, %arg1: i32) -> (i32, i32) {
    %c0_i32 = arith.constant 0 : i32
    %c0_i32_0 = arith.constant 0 : i32
    return %c0_i32, %arg0 : i32, i32
  }
  func.func @transform_2(%arg0: i32, %arg1: i32) -> (i32, i32) {
    %c0_i32 = arith.constant 0 : i32
    %c0_i32_0 = arith.constant 0 : i32
    return %c0_i32, %arg0 : i32, i32
  }
  func.func @transform_3(%arg0: i32, %arg1: i32) -> (i32, i32) {
    %c0_i32 = arith.constant 0 : i32
    return %arg1, %arg0 : i32, i32
  }
}

</mosaic_0001>

<llo_original>
// kernel: tpu_custom_call.1
$region0: #{tpu_custom_call.1}
  #allocation0 [shape = 'u32[]', space=smem, size = 0x4, offset = 0x4, fixed_abs, tag = 'smem constant byte address 0x4 - core index']
  #allocation1 [shape = 'u32[144,128]{1,0:T(1,128)}', space=vmem, size = 0x12000, scoped, tag = 'internal scratch']
  %s0 = inlined_call_operand.vmem [shape: bf16[64,20], index: 0, kind: input, shape index: {}]
  %s1 = inlined_call_operand.vmem [shape: bf16[20,128], index: 1, kind: input, shape index: {}]
  %s2 = inlined_call_operand.vmem [shape: f32[1,128], index: 2, kind: input, shape index: {}]
  %s3 = inlined_call_operand.hbm [shape: bf16[64,128], index: 3, kind: output, shape index: {}]
  %s4 = sld [smem:[#allocation0]]
  $region22: #{tpu_custom_call.1} parent=0
    _
  %s6 = ssub.s32 1, %s4
  %s7 = scalar_select 0, %s6, %s4
  $region1: #{tpu_custom_call.1} parent=0
    #allocation2 [shape = 'u8[16384]{0}', space=vmem, size = 0x4000, scoped, tag = 'output window, operand 0, single buffered']
    #allocation3 [shape = 's32[1]{0}', space=sflag, size = 0x4, scoped, tag = 'scoped memory for tpu_custom_call.1']
    %8 = vsyncpa [#allocation3], 0
    // Predicated region
    $region2: #{tpu_custom_call.1} parent=1 // pred_check
      _
    $region3: #{tpu_custom_call.1} parent=1 // pred_check_branch
      %10 = sbr.rel (0) target = $region5
    $region4: #{tpu_custom_call.1} parent=1 // pred_region
      _
    $region5: #{tpu_custom_call.1} parent=1 // pred_fallthru
      _
    // Predicated region
    $region6: #{tpu_custom_call.1} parent=1 // pred_check
      _
    $region7: #{tpu_custom_call.1} parent=1 // pred_check_branch
      %12 = sbr.rel (0) target = $region9
    $region8: #{tpu_custom_call.1} parent=1 // pred_region
      _
    $region9: #{tpu_custom_call.1} parent=1 // pred_fallthru
      _
    // Predicated region
    $region10: #{tpu_custom_call.1} parent=1 // pred_check
      _
    $region11: #{tpu_custom_call.1} parent=1 // pred_check_branch
      %14 = sbr.rel (0) target = $region13
    $region12: #{tpu_custom_call.1} parent=1 // pred_region
      _
    $region13: #{tpu_custom_call.1} parent=1 // pred_fallthru
      _
    %v16 = vld [vmem:[%s0] sm:$0xf]
    %v17 = vld [vmem:[%s0 + $0x4] sm:$0xf]
    %v18 = vld [vmem:[%s0 + $0x8] sm:$0xf]
    %v19 = vld [vmem:[%s0 + $0xc] sm:$0xf]
    %v20 = vld [vmem:[%s0 + $0x10] sm:$0xf]
    %v21 = vld [vmem:[%s0 + $0x14] sm:$0xf]
    %v22 = vld [vmem:[%s0 + $0x18] sm:$0xf]
    %v23 = vld [vmem:[%s0 + $0x1c] sm:$0xf]
    %v24 = vld [vmem:[%s1] sm:$0xf]
    %v25 = vld [vmem:[%s1 + $0x4] sm:$0xf]
    %v26 = vld [vmem:[%s1 + $0x8] sm:$0x3]
    %v27 = vld [vmem:[%s2] sm:$0x1]
    %v29 = vlaneseq
    %v30 = vshrl.u32 %v29, 7
    %v31 = vsub.s32 0, %v30
    %v32 = vrot.slane %v27, %v31
    %v42 = vunpack.c.l.b16 %v16
    %v43 = vunpack.c.l.b16 %v17
    %v44 = vunpack.c.l.b16 %v18
    %v45 = vunpack.c.l.b16 %v19
    %v46 = vunpack.c.l.b16 %v20
    %v47 = vunpack.c.l.b16 %v21
    %v48 = vunpack.c.l.b16 %v22
    %v49 = vunpack.c.l.b16 %v23
    %v50 = vpack.c.b16 %v43, %v42
    %v51 = vpack.c.b16 %v45, %v44
    %v52 = vpack.c.b16 %v47, %v46
    %v53 = vpack.c.b16 %v49, %v48
    %v57 = vunpack.c.l.b16 %v24
    %v58 = vunpack.c.l.b16 %v25
    %v59 = vunpack.c.l.b16 %v26
    %v60 = vpack.c.b16 %v58, %v57
    %v61 = vpack.c.b16 %v59, %v59
    %vm63 = vcmask 162816
    %v65 = vsel %vm63, %v50, 0
    %v68 = vsel %vm63, %v51, 0
    %v71 = vsel %vm63, %v52, 0
    %v74 = vsel %vm63, %v53, 0
    %vm76 = vcmask 1041408
    %v78 = vsel %vm76, %v61, 0
    %80 = vmatprep.subr.bf16.mxu0 0
    %81 = vmatpush1.bf16.msra.mxu0 %v60
    %82 = vmatprep.subr.bf16.mxu0 0
    %83 = vmatpush1.bf16.msra.mxu0 %v78
    %84 = vmatprep.subr.bf16.mxu0 0
    %85 = vmatpush1.bf16.msra.mxu0 0
    %86 = vmatprep.subr.bf16.mxu0 0
    %87 = vmatpush1.bf16.msra.mxu0 0
    %88 = vmatprep.subr.bf16.mxu0 0
    %89 = vmatpush1.bf16.msra.mxu0 0
    %90 = vmatprep.subr.bf16.mxu0 0
    %91 = vmatpush1.bf16.msra.mxu0 0
    %92 = vmatprep.subr.bf16.mxu0 0
    %93 = vmatpush1.bf16.msra.mxu0 0
    %94 = vmatprep.subr.bf16.mxu0 0
    %95 = vmatpush1.bf16.msra.mxu0 0
    %96 = vmatprep.subr.bf16.mxu0 0
    %97 = vmatpush1.bf16.msra.mxu0 0
    %98 = vmatprep.subr.bf16.mxu0 0
    %99 = vmatpush1.bf16.msra.mxu0 0
    %100 = vmatprep.subr.bf16.mxu0 0
    %101 = vmatpush1.bf16.msra.mxu0 0
    %102 = vmatprep.subr.bf16.mxu0 0
    %103 = vmatpush1.bf16.msra.mxu0 0
    %104 = vmatprep.subr.bf16.mxu0 0
    %105 = vmatpush1.bf16.msra.mxu0 0
    %106 = vmatprep.subr.bf16.mxu0 0
    %107 = vmatpush1.bf16.msra.mxu0 0
    %108 = vmatprep.subr.bf16.mxu0 0
    %109 = vmatpush1.bf16.msra.mxu0 0
    %110 = vmatprep.subr.bf16.mxu0 0
    %111 = vmatpush1.bf16.msra.mxu0 0
    %112 = vmatprep.mubr.bf16.mxu0 0
    %113 = vmatmul.mubr.bf16.gmra.mrb[0].mxu0 %v65
    %v114 = vpop.f32.mrb[0].mxu0
    %v115 = vadd.f32 %v32, %v114
    %v116 = vpop.f32.mrb[0].mxu0
    %v117 = vpop.f32.mrb[0].mxu0
    %v118 = vadd.f32 %v32, %v117
    %v119 = vpop.f32.mrb[0].mxu0
    %120 = vmatprep.mubr.bf16.mxu0 0
    %121 = vmatmul.mubr.bf16.gmra.mrb[0].mxu0 %v68
    %v122 = vpop.f32.mrb[0].mxu0
    %v123 = vadd.f32 %v32, %v122
    %v124 = vpop.f32.mrb[0].mxu0
    %v125 = vpop.f32.mrb[0].mxu0
    %v126 = vadd.f32 %v32, %v125
    %v127 = vpop.f32.mrb[0].mxu0
    %128 = vmatprep.mubr.bf16.mxu0 0
    %129 = vmatmul.mubr.bf16.gmra.mrb[0].mxu0 %v71
    %v130 = vpop.f32.mrb[0].mxu0
    %v131 = vadd.f32 %v32, %v130
    %v132 = vpop.f32.mrb[0].mxu0
    %v133 = vpop.f32.mrb[0].mxu0
    %v134 = vadd.f32 %v32, %v133
    %v135 = vpop.f32.mrb[0].mxu0
    %136 = vmatprep.mubr.bf16.mxu0 0
    %137 = vmatmul.mubr.bf16.gmra.mrb[0].mxu0 %v74
    %v138 = vpop.f32.mrb[0].mxu0
    %v139 = vadd.f32 %v32, %v138
    %v140 = vpop.f32.mrb[0].mxu0
    %v141 = vpop.f32.mrb[0].mxu0
    %v142 = vadd.f32 %v32, %v141
    %v143 = vpop.f32.mrb[0].mxu0
    %144 = vdwg.mxu0
    %vm145 = vcmp.ge.f32.partialorder %v115, 0.0
    %vm146 = vcmp.ge.f32.partialorder %v118, 0.0
    %vm147 = vcmp.ge.f32.partialorder %v123, 0.0
    %vm148 = vcmp.ge.f32.partialorder %v126, 0.0
    %vm149 = vcmp.ge.f32.partialorder %v131, 0.0
    %vm150 = vcmp.ge.f32.partialorder %v134, 0.0
    %vm151 = vcmp.ge.f32.partialorder %v139, 0.0
    %vm152 = vcmp.ge.f32.partialorder %v142, 0.0
    %v153 = vmul.f32 %v115, 0.1
    %v154 = vmul.f32 %v118, 0.1
    %v155 = vmul.f32 %v123, 0.1
    %v156 = vmul.f32 %v126, 0.1
    %v157 = vmul.f32 %v131, 0.1
    %v158 = vmul.f32 %v134, 0.1
    %v159 = vmul.f32 %v139, 0.1
    %v160 = vmul.f32 %v142, 0.1
    %v161 = vsel %vm145, %v115, %v153
    %v162 = vsel %vm146, %v118, %v154
    %v163 = vsel %vm147, %v123, %v155
    %v164 = vsel %vm148, %v126, %v156
    %v165 = vsel %vm149, %v131, %v157
    %v166 = vsel %vm150, %v134, %v158
    %v167 = vsel %vm151, %v139, %v159
    %v168 = vsel %vm152, %v142, %v160
    %v169 = vpack.c.bf16 %v162, %v161
    %v170 = vpack.c.bf16 %v164, %v163
    %v171 = vpack.c.bf16 %v166, %v165
    %v172 = vpack.c.bf16 %v168, %v167
    %v177 = vunpack.c.l.b16 %v169
    %v178 = vunpack.c.h.b16 %v169
    %v179 = vunpack.c.l.b16 %v170
    %v180 = vunpack.c.h.b16 %v170
    %v181 = vunpack.c.l.b16 %v171
    %v182 = vunpack.c.h.b16 %v171
    %v183 = vunpack.c.l.b16 %v172
    %v184 = vunpack.c.h.b16 %v172
    %v185 = vpack.c.b16 %v177, %v177
    %v186 = vpack.c.b16 %v178, %v178
    %v187 = vpack.c.b16 %v179, %v179
    %v188 = vpack.c.b16 %v180, %v180
    %v189 = vpack.c.b16 %v181, %v181
    %v190 = vpack.c.b16 %v182, %v182
    %v191 = vpack.c.b16 %v183, %v183
    %v192 = vpack.c.b16 %v184, %v184
    %201 = vst [vmem:[#allocation2] sm:$0xf] %v185
    %202 = vst [vmem:[#allocation2 + $0x4] sm:$0xf] %v186
    %203 = vst [vmem:[#allocation2 + $0x8] sm:$0xf] %v187
    %204 = vst [vmem:[#allocation2 + $0xc] sm:$0xf] %v188
    %205 = vst [vmem:[#allocation2 + $0x10] sm:$0xf] %v189
    %206 = vst [vmem:[#allocation2 + $0x14] sm:$0xf] %v190
    %207 = vst [vmem:[#allocation2 + $0x18] sm:$0xf] %v191
    %208 = vst [vmem:[#allocation2 + $0x1c] sm:$0xf] %v192
    // Predicated region
    $region14: #{tpu_custom_call.1} parent=1 // pred_check
      _
    $region15: #{tpu_custom_call.1} parent=1 // pred_check_branch
      %210 = sbr.rel (0) target = $region17
    $region16: #{tpu_custom_call.1} parent=1 // pred_region
      %s212 = ssub.s32 512, 512
      %213 = vsyncadd [#allocation3], %s212
      %s214 = sshll.u32 [#allocation2], 4
      %s215 = int_to_ptr.vmem [resolvable:$true] %s214
      %220 = dma.vmem_to_hbm [thread:$0]  %s215, 512, %s3, [#allocation3], 64, 64, 4
    $region17: #{tpu_custom_call.1} parent=1 // pred_fallthru
      _
    // Predicated region
    $region18: #{tpu_custom_call.1} parent=1 // pred_check
      _
    $region19: #{tpu_custom_call.1} parent=1 // pred_check_branch
      %222 = sbr.rel (0) target = $region21
    $region20: #{tpu_custom_call.1} parent=1 // pred_region
      %223 = dma.done [#allocation3], 512
    $region21: #{tpu_custom_call.1} parent=1 // pred_fallthru
      _
    %224 = vsyncpa [#allocation3], 1

</llo_original>
